<compile_context>
chip_gen: v5e
topology: v5e:2x2
jax: 0.10.0
libtpu: 0.0.40
codegen_flags: <defaults>
</compile_context>

<pallas_src>
import functools

import jax
import jax.numpy as jnp
from jax.experimental import pallas as pl
from jax.experimental.pallas import tpu as pltpu


# ---------------------------------------------------------------------------
# Kernels
# ---------------------------------------------------------------------------
def _affine_store(xn, alpha_ref, bias_ref, o_ref, affine_bf16):
    """Final `alpha * xn + bias` store (stats stay f32; affine optionally bf16)."""
    if affine_bf16:
        xn = xn.astype(jnp.bfloat16)
        alpha = alpha_ref[...].astype(jnp.bfloat16)
        bias = bias_ref[...].astype(jnp.bfloat16)
    else:
        alpha = alpha_ref[...].astype(jnp.float32)
        bias = bias_ref[...].astype(jnp.float32)
    # (1, D) alpha/bias broadcast implicitly against (tr, D) -- no broadcast_to.
    o_ref[...] = (alpha * xn + bias).astype(o_ref.dtype)


def _norm_kernel(x_ref, alpha_ref, bias_ref, o_ref, *, eps, affine_bf16):
    """General path: one logical row per block row (lane dim == d_model)."""
    x = x_ref[...].astype(jnp.float32)
    d = x.shape[-1]
    mean = jnp.mean(x, axis=-1, keepdims=True)
    xc = x - mean
    # torch.std() default is UNBIASED (ddof=1).  Static guard for d == 1
    # (torch would produce NaN there; we return `bias` instead).
    var = jnp.sum(xc * xc, axis=-1, keepdims=True) * (1.0 / max(d - 1, 1))
    inv = pl.reciprocal(jnp.sqrt(var) + eps, approx=False)
    _affine_store(xc * inv, alpha_ref, bias_ref, o_ref, affine_bf16)


def _norm_kernel_packed(x_ref, alpha_ref, bias_ref, o_ref, *, eps, d, affine_bf16):
    """Lane-dense path for d_model < 128 with 128 % d_model == 0.

    The wrapper packs g = 128 // d rows per 128-lane group.  Per-row mean/var
    become a segmented all-reduce over aligned length-`d` lane segments,
    implemented as an exact f32 XOR-butterfly using pltpu.roll (lane rotations
    use XLU slots, which are otherwise idle in this kernel).
    """
    x = x_ref[...].astype(jnp.float32)                       # (tr, 128)
    lanes = x.shape[-1]
    lane = jax.lax.broadcasted_iota(jnp.int32, x.shape, dimension=x.ndim - 1)

    def seg_allsum(v):
        s = 1
        while s < d:
            # XOR-butterfly: lane j combines with its partner lane j ^ s.
            # Segments are d-aligned and s < d, so partners never cross
            # segment boundaries (no wrap contamination).
            from_right = pltpu.roll(v, shift=lanes - s, axis=1)  # value of lane j+s
            from_left = pltpu.roll(v, shift=s, axis=1)           # value of lane j-s
            v = v + jnp.where((lane & s) == 0, from_right, from_left)
            s *= 2
        return v

    mean = seg_allsum(x) * (1.0 / d)
    xc = x - mean
    var = seg_allsum(xc * xc) * (1.0 / max(d - 1, 1))
    inv = pl.reciprocal(jnp.sqrt(var) + eps, approx=False)
    _affine_store(xc * inv, alpha_ref, bias_ref, o_ref, affine_bf16)


# ---------------------------------------------------------------------------
# Wrapper helpers
# ---------------------------------------------------------------------------
def _sublane(dtype) -> int:
    itemsize = jnp.dtype(dtype).itemsize
    if itemsize >= 4:
        return 8
    if itemsize == 2:
        return 16
    return 32


def _gen_params():
    """(target_block_bytes, vmem_cap_for_limit, v7x_like) per TPU generation."""
    vmem_cap = None
    try:
        vmem_cap = int(pltpu.get_tpu_info().vmem_capacity_bytes)
    except Exception:
        vmem_cap = None
    if vmem_cap is None:
        vmem_cap = 64 << 20  # conservative: assume the smallest (v7x-class) VMEM
    if vmem_cap <= (64 << 20):
        # v7x-class: 64 MiB physical VMEM, ~3.2 TB/s HBM -> larger blocks to
        # amortize ~0.35us/step, cap limit well below physical VMEM.
        return 4 << 20, int(min(vmem_cap - (12 << 20), 48 << 20)), True
    # v5e/v6e: 128 MiB physical, <=1.4 TB/s HBM -> 2 MiB blocks already >85%
    # of roofline; plenty of VMEM headroom.
    return 2 << 20, 96 << 20, False


def _choose_tile_rows(rows, d_lane, dtype, target_block_bytes, sub):
    """Sublane-aligned row tile; big blocks, but keep >= 2 grid steps."""
    if rows <= sub:
        return int(rows)  # single full-array block, no partial tile
    itemsize = jnp.dtype(dtype).itemsize
    row_bytes = max(1, d_lane * itemsize)
    tr = max(sub, target_block_bytes // row_bytes)
    tr = (tr // sub) * sub
    # Keep at least 2 grid steps when the problem allows it so the "parallel"
    # axis feeds both v7x TensorCores (negligible cost on single-TC chips).
    if rows >= 2 * sub:
        half = max(sub, ((rows // 2) // sub) * sub)
        tr = min(tr, half)
    rows_aligned = pl.cdiv(rows, sub) * sub
    tr = max(sub, min(tr, rows_aligned))
    return int(tr)


# ---------------------------------------------------------------------------
# Public entry point
# ---------------------------------------------------------------------------
def norm_forward(x, alpha, bias, eps=1e-6):
    """Pallas Norm matching the PyTorch module's forward semantics."""
    orig_shape = x.shape
    d_model = orig_shape[-1]
    rows = 1
    for s in orig_shape[:-1]:
        rows *= s

    target_block_bytes, vmem_cap_use, v7x_like = _gen_params()
    affine_bf16 = bool(v7x_like and x.dtype == jnp.bfloat16)

    # Lane-dense packing for narrow d_model (biggest measured store lever).
    g = 128 // d_model if (0 < d_model < 128 and 128 % d_model == 0) else 1
    use_packed = g > 1 and rows > 0 and rows % g == 0

    alpha1 = jnp.asarray(alpha).reshape(1, d_model)
    bias1 = jnp.asarray(bias).reshape(1, d_model)

    if use_packed:
        d_lane = 128
        n_rows = rows // g
        x2 = x.reshape(n_rows, d_lane)            # contiguous reshape, no copy
        alpha2 = jnp.tile(alpha1, (1, g))
        bias2 = jnp.tile(bias1, (1, g))
        kernel = functools.partial(_norm_kernel_packed, eps=eps, d=d_model,
                                   affine_bf16=affine_bf16)
    else:
        d_lane = d_model
        n_rows = rows
        x2 = x.reshape(n_rows, d_lane)
        alpha2, bias2 = alpha1, bias1
        kernel = functools.partial(_norm_kernel, eps=eps, affine_bf16=affine_bf16)

    sub = _sublane(x.dtype)
    tr = _choose_tile_rows(n_rows, d_lane, x.dtype, target_block_bytes, sub)
    # cdiv grid, NO padding: Pallas clips the trailing partial block (rows are
    # independent, garbage tail rows are computed but their writes dropped).
    num_tiles = pl.cdiv(n_rows, tr)

    # VMEM budget: double-buffered in + out blocks, ~3 block-sized f32
    # temporaries (astype/xc/xc*xc), params, headroom.  Capped per generation.
    itemsize = jnp.dtype(x.dtype).itemsize
    block_bytes = tr * d_lane * itemsize
    f32_tmp_bytes = 3 * tr * d_lane * 4
    vmem_needed = 4 * block_bytes + f32_tmp_bytes + 8 * d_lane * 4 + (2 << 20)
    vmem_limit = int(min(max(vmem_needed, 16 << 20), vmem_cap_use))

    out = pl.pallas_call(
        kernel,
        out_shape=jax.ShapeDtypeStruct((n_rows, d_lane), x.dtype),
        grid_spec=pltpu.PrefetchScalarGridSpec(
            num_scalar_prefetch=0,
            grid=(num_tiles,),
            in_specs=[
                pl.BlockSpec((tr, d_lane), lambda i: (i, 0)),
                pl.BlockSpec((1, d_lane), lambda i: (0, 0)),
                pl.BlockSpec((1, d_lane), lambda i: (0, 0)),
            ],
            out_specs=pl.BlockSpec((tr, d_lane), lambda i: (i, 0)),
        ),
        compiler_params=pltpu.CompilerParams(
            dimension_semantics=("parallel",),
            vmem_limit_bytes=vmem_limit,
        ),
    )(x2, alpha2, bias2)

    return out.reshape(orig_shape)


def norm_reference(x, alpha, bias, eps=1e-6):
    d = x.shape[-1]
    mean = jnp.mean(x, axis=-1, keepdims=True)
    xc = x - mean
    var = jnp.sum(xc * xc, axis=-1, keepdims=True) / max(d - 1, 1)
    std = jnp.sqrt(var)
    return alpha * xc / (std + eps) + bias


if __name__ == "__main__":
    key = jax.random.PRNGKey(0)
    k1, k2 = jax.random.split(key)

    # Case 1: narrow d_model (32) -> exercises the lane-dense packed path.
    B, S, D = 2, 8, 32
    x = jax.random.normal(k1, (B, S, D), dtype=jnp.float32)
    alpha = jnp.ones((D,), dtype=jnp.float32)   # module __init__: ones / zeros
    bias = jnp.zeros((D,), dtype=jnp.float32)
    out = jax.block_until_ready(norm_forward(x, alpha, bias))
    ref = norm_reference(x, alpha, bias)
    assert out.shape == x.shape
    assert jnp.allclose(out, ref, atol=1e-5, rtol=1e-5), "packed path mismatch"

    # Case 2: lane-wide d_model (128) -> exercises the general multi-tile path.
    D2 = 128
    x2 = jax.random.normal(k2, (B, S, D2), dtype=jnp.float32)
    alpha2 = jnp.ones((D2,), dtype=jnp.float32)
    bias2 = jnp.zeros((D2,), dtype=jnp.float32)
    out2 = jax.block_until_ready(norm_forward(x2, alpha2, bias2))
    ref2 = norm_reference(x2, alpha2, bias2)
    assert out2.shape == x2.shape
    assert jnp.allclose(out2, ref2, atol=1e-5, rtol=1e-5), "general path mismatch"

    print("KERNEL_OK")
</pallas_src>

<mosaic_0001>
module attributes {stable_mosaic.version = 11 : i64} {
  func.func @_norm_kernel_packed(%arg0: i32, %arg1: memref<4x128xf32, #tpu.memory_space<vmem>>, %arg2: memref<1x128xf32, #tpu.memory_space<vmem>>, %arg3: memref<1x128xf32, #tpu.memory_space<vmem>>, %arg4: memref<4x128xf32, #tpu.memory_space<vmem>>) attributes {dimension_semantics = [#tpu.dimension_semantics<parallel>], iteration_bounds = array<i64: 1>, scalar_prefetch = 0 : i64, scratch_operands = 0 : i64, tpu.core_type = #tpu.core_type<tc>, window_params = [{transform_indices = @transform_0, window_bounds = array<i64: 4, 128>}, {pipeline_mode = #tpu.pipeline_mode<synchronous>, transform_indices = @transform_1, window_bounds = array<i64: 1, 128>}, {pipeline_mode = #tpu.pipeline_mode<synchronous>, transform_indices = @transform_2, window_bounds = array<i64: 1, 128>}, {transform_indices = @transform_3, window_bounds = array<i64: 4, 128>}]} {
    %c0 = arith.constant 0 : index
    %c0_0 = arith.constant 0 : index
    %0 = vector.load %arg1[%c0, %c0_0] : memref<4x128xf32, #tpu.memory_space<vmem>>, vector<4x128xf32>
    %1 = tpu.iota {dimensions = array<i32: 1>} : vector<4x128xi32>
    %c127_i32 = arith.constant 127 : i32
    %2 = tpu.dynamic_rotate %0 by %c127_i32 dim 1 : vector<4x128xf32>, i32 -> vector<4x128xf32>
    %c1_i32 = arith.constant 1 : i32
    %3 = tpu.dynamic_rotate %0 by %c1_i32 dim 1 : vector<4x128xf32>, i32 -> vector<4x128xf32>
    %c1_i32_1 = arith.constant 1 : i32
    %4 = vector.broadcast %c1_i32_1 : i32 to vector<4x128xi32>
    %5 = arith.andi %1, %4 : vector<4x128xi32>
    %c0_i32 = arith.constant 0 : i32
    %6 = vector.broadcast %c0_i32 : i32 to vector<4x128xi32>
    %7 = arith.cmpi eq, %5, %6 : vector<4x128xi32>
    %8 = arith.select %7, %2, %3 : vector<4x128xi1>, vector<4x128xf32>
    %9 = arith.addf %0, %8 : vector<4x128xf32>
    %c126_i32 = arith.constant 126 : i32
    %10 = tpu.dynamic_rotate %9 by %c126_i32 dim 1 : vector<4x128xf32>, i32 -> vector<4x128xf32>
    %c2_i32 = arith.constant 2 : i32
    %11 = tpu.dynamic_rotate %9 by %c2_i32 dim 1 : vector<4x128xf32>, i32 -> vector<4x128xf32>
    %c2_i32_2 = arith.constant 2 : i32
    %12 = vector.broadcast %c2_i32_2 : i32 to vector<4x128xi32>
    %13 = arith.andi %1, %12 : vector<4x128xi32>
    %c0_i32_3 = arith.constant 0 : i32
    %14 = vector.broadcast %c0_i32_3 : i32 to vector<4x128xi32>
    %15 = arith.cmpi eq, %13, %14 : vector<4x128xi32>
    %16 = arith.select %15, %10, %11 : vector<4x128xi1>, vector<4x128xf32>
    %17 = arith.addf %9, %16 : vector<4x128xf32>
    %c124_i32 = arith.constant 124 : i32
    %18 = tpu.dynamic_rotate %17 by %c124_i32 dim 1 : vector<4x128xf32>, i32 -> vector<4x128xf32>
    %c4_i32 = arith.constant 4 : i32
    %19 = tpu.dynamic_rotate %17 by %c4_i32 dim 1 : vector<4x128xf32>, i32 -> vector<4x128xf32>
    %c4_i32_4 = arith.constant 4 : i32
    %20 = vector.broadcast %c4_i32_4 : i32 to vector<4x128xi32>
    %21 = arith.andi %1, %20 : vector<4x128xi32>
    %c0_i32_5 = arith.constant 0 : i32
    %22 = vector.broadcast %c0_i32_5 : i32 to vector<4x128xi32>
    %23 = arith.cmpi eq, %21, %22 : vector<4x128xi32>
    %24 = arith.select %23, %18, %19 : vector<4x128xi1>, vector<4x128xf32>
    %25 = arith.addf %17, %24 : vector<4x128xf32>
    %c120_i32 = arith.constant 120 : i32
    %26 = tpu.dynamic_rotate %25 by %c120_i32 dim 1 : vector<4x128xf32>, i32 -> vector<4x128xf32>
    %c8_i32 = arith.constant 8 : i32
    %27 = tpu.dynamic_rotate %25 by %c8_i32 dim 1 : vector<4x128xf32>, i32 -> vector<4x128xf32>
    %c8_i32_6 = arith.constant 8 : i32
    %28 = vector.broadcast %c8_i32_6 : i32 to vector<4x128xi32>
    %29 = arith.andi %1, %28 : vector<4x128xi32>
    %c0_i32_7 = arith.constant 0 : i32
    %30 = vector.broadcast %c0_i32_7 : i32 to vector<4x128xi32>
    %31 = arith.cmpi eq, %29, %30 : vector<4x128xi32>
    %32 = arith.select %31, %26, %27 : vector<4x128xi1>, vector<4x128xf32>
    %33 = arith.addf %25, %32 : vector<4x128xf32>
    %c112_i32 = arith.constant 112 : i32
    %34 = tpu.dynamic_rotate %33 by %c112_i32 dim 1 : vector<4x128xf32>, i32 -> vector<4x128xf32>
    %c16_i32 = arith.constant 16 : i32
    %35 = tpu.dynamic_rotate %33 by %c16_i32 dim 1 : vector<4x128xf32>, i32 -> vector<4x128xf32>
    %c16_i32_8 = arith.constant 16 : i32
    %36 = vector.broadcast %c16_i32_8 : i32 to vector<4x128xi32>
    %37 = arith.andi %1, %36 : vector<4x128xi32>
    %c0_i32_9 = arith.constant 0 : i32
    %38 = vector.broadcast %c0_i32_9 : i32 to vector<4x128xi32>
    %39 = arith.cmpi eq, %37, %38 : vector<4x128xi32>
    %40 = arith.select %39, %34, %35 : vector<4x128xi1>, vector<4x128xf32>
    %41 = arith.addf %33, %40 : vector<4x128xf32>
    %cst = arith.constant 3.125000e-02 : f32
    %42 = vector.broadcast %cst : f32 to vector<4x128xf32>
    %43 = arith.mulf %41, %42 : vector<4x128xf32>
    %44 = arith.subf %0, %43 : vector<4x128xf32>
    %45 = arith.mulf %44, %44 : vector<4x128xf32>
    %c127_i32_10 = arith.constant 127 : i32
    %46 = tpu.dynamic_rotate %45 by %c127_i32_10 dim 1 : vector<4x128xf32>, i32 -> vector<4x128xf32>
    %c1_i32_11 = arith.constant 1 : i32
    %47 = tpu.dynamic_rotate %45 by %c1_i32_11 dim 1 : vector<4x128xf32>, i32 -> vector<4x128xf32>
    %c1_i32_12 = arith.constant 1 : i32
    %48 = vector.broadcast %c1_i32_12 : i32 to vector<4x128xi32>
    %49 = arith.andi %1, %48 : vector<4x128xi32>
    %c0_i32_13 = arith.constant 0 : i32
    %50 = vector.broadcast %c0_i32_13 : i32 to vector<4x128xi32>
    %51 = arith.cmpi eq, %49, %50 : vector<4x128xi32>
    %52 = arith.select %51, %46, %47 : vector<4x128xi1>, vector<4x128xf32>
    %53 = arith.addf %45, %52 : vector<4x128xf32>
    %c126_i32_14 = arith.constant 126 : i32
    %54 = tpu.dynamic_rotate %53 by %c126_i32_14 dim 1 : vector<4x128xf32>, i32 -> vector<4x128xf32>
    %c2_i32_15 = arith.constant 2 : i32
    %55 = tpu.dynamic_rotate %53 by %c2_i32_15 dim 1 : vector<4x128xf32>, i32 -> vector<4x128xf32>
    %c2_i32_16 = arith.constant 2 : i32
    %56 = vector.broadcast %c2_i32_16 : i32 to vector<4x128xi32>
    %57 = arith.andi %1, %56 : vector<4x128xi32>
    %c0_i32_17 = arith.constant 0 : i32
    %58 = vector.broadcast %c0_i32_17 : i32 to vector<4x128xi32>
    %59 = arith.cmpi eq, %57, %58 : vector<4x128xi32>
    %60 = arith.select %59, %54, %55 : vector<4x128xi1>, vector<4x128xf32>
    %61 = arith.addf %53, %60 : vector<4x128xf32>
    %c124_i32_18 = arith.constant 124 : i32
    %62 = tpu.dynamic_rotate %61 by %c124_i32_18 dim 1 : vector<4x128xf32>, i32 -> vector<4x128xf32>
    %c4_i32_19 = arith.constant 4 : i32
    %63 = tpu.dynamic_rotate %61 by %c4_i32_19 dim 1 : vector<4x128xf32>, i32 -> vector<4x128xf32>
    %c4_i32_20 = arith.constant 4 : i32
    %64 = vector.broadcast %c4_i32_20 : i32 to vector<4x128xi32>
    %65 = arith.andi %1, %64 : vector<4x128xi32>
    %c0_i32_21 = arith.constant 0 : i32
    %66 = vector.broadcast %c0_i32_21 : i32 to vector<4x128xi32>
    %67 = arith.cmpi eq, %65, %66 : vector<4x128xi32>
    %68 = arith.select %67, %62, %63 : vector<4x128xi1>, vector<4x128xf32>
    %69 = arith.addf %61, %68 : vector<4x128xf32>
    %c120_i32_22 = arith.constant 120 : i32
    %70 = tpu.dynamic_rotate %69 by %c120_i32_22 dim 1 : vector<4x128xf32>, i32 -> vector<4x128xf32>
    %c8_i32_23 = arith.constant 8 : i32
    %71 = tpu.dynamic_rotate %69 by %c8_i32_23 dim 1 : vector<4x128xf32>, i32 -> vector<4x128xf32>
    %c8_i32_24 = arith.constant 8 : i32
    %72 = vector.broadcast %c8_i32_24 : i32 to vector<4x128xi32>
    %73 = arith.andi %1, %72 : vector<4x128xi32>
    %c0_i32_25 = arith.constant 0 : i32
    %74 = vector.broadcast %c0_i32_25 : i32 to vector<4x128xi32>
    %75 = arith.cmpi eq, %73, %74 : vector<4x128xi32>
    %76 = arith.select %75, %70, %71 : vector<4x128xi1>, vector<4x128xf32>
    %77 = arith.addf %69, %76 : vector<4x128xf32>
    %c112_i32_26 = arith.constant 112 : i32
    %78 = tpu.dynamic_rotate %77 by %c112_i32_26 dim 1 : vector<4x128xf32>, i32 -> vector<4x128xf32>
    %c16_i32_27 = arith.constant 16 : i32
    %79 = tpu.dynamic_rotate %77 by %c16_i32_27 dim 1 : vector<4x128xf32>, i32 -> vector<4x128xf32>
    %c16_i32_28 = arith.constant 16 : i32
    %80 = vector.broadcast %c16_i32_28 : i32 to vector<4x128xi32>
    %81 = arith.andi %1, %80 : vector<4x128xi32>
    %c0_i32_29 = arith.constant 0 : i32
    %82 = vector.broadcast %c0_i32_29 : i32 to vector<4x128xi32>
    %83 = arith.cmpi eq, %81, %82 : vector<4x128xi32>
    %84 = arith.select %83, %78, %79 : vector<4x128xi1>, vector<4x128xf32>
    %85 = arith.addf %77, %84 : vector<4x128xf32>
    %cst_30 = arith.constant 0.0322580636 : f32
    %86 = vector.broadcast %cst_30 : f32 to vector<4x128xf32>
    %87 = arith.mulf %85, %86 : vector<4x128xf32>
    %88 = math.sqrt %87 : vector<4x128xf32>
    %cst_31 = arith.constant 9.99999997E-7 : f32
    %89 = vector.broadcast %cst_31 : f32 to vector<4x128xf32>
    %90 = arith.addf %88, %89 : vector<4x128xf32>
    %91 = tpu.reciprocal %90 : vector<4x128xf32> -> vector<4x128xf32>
    %92 = arith.mulf %44, %91 : vector<4x128xf32>
    %c0_32 = arith.constant 0 : index
    %c0_33 = arith.constant 0 : index
    %93 = vector.load %arg2[%c0_32, %c0_33] : memref<1x128xf32, #tpu.memory_space<vmem>>, vector<1x128xf32>
    %c0_34 = arith.constant 0 : index
    %c0_35 = arith.constant 0 : index
    %94 = vector.load %arg3[%c0_34, %c0_35] : memref<1x128xf32, #tpu.memory_space<vmem>>, vector<1x128xf32>
    %95 = vector.broadcast %93 : vector<1x128xf32> to vector<4x128xf32>
    %96 = arith.mulf %95, %92 : vector<4x128xf32>
    %97 = vector.broadcast %94 : vector<1x128xf32> to vector<4x128xf32>
    %98 = arith.addf %96, %97 : vector<4x128xf32>
    %c0_36 = arith.constant 0 : index
    %c0_37 = arith.constant 0 : index
    %99 = vector.load %arg4[%c0_36, %c0_37] : memref<4x128xf32, #tpu.memory_space<vmem>>, vector<4x128xf32>
    tpu.vector_store %arg4[%c0_36, %c0_37], %98 {strides = array<i32>} : memref<4x128xf32, #tpu.memory_space<vmem>>, vector<4x128xf32>,
    return
  }
  func.func @transform_0(%arg0: i32) -> (i32, i32) {
    %c0_i32 = arith.constant 0 : i32
    %c0_i32_0 = arith.constant 0 : i32
    return %arg0, %c0_i32 : i32, i32
  }
  func.func @transform_1(%arg0: i32) -> (i32, i32) {
    %c0_i32 = arith.constant 0 : i32
    %c0_i32_0 = arith.constant 0 : i32
    %c0_i32_1 = arith.constant 0 : i32
    return %c0_i32, %c0_i32_0 : i32, i32
  }
  func.func @transform_2(%arg0: i32) -> (i32, i32) {
    %c0_i32 = arith.constant 0 : i32
    %c0_i32_0 = arith.constant 0 : i32
    %c0_i32_1 = arith.constant 0 : i32
    return %c0_i32, %c0_i32_0 : i32, i32
  }
  func.func @transform_3(%arg0: i32) -> (i32, i32) {
    %c0_i32 = arith.constant 0 : i32
    %c0_i32_0 = arith.constant 0 : i32
    return %arg0, %c0_i32 : i32, i32
  }
}

</mosaic_0001>

<llo_original>
// kernel: tpu_custom_call.1
$region0: #{tpu_custom_call.1}
  #allocation0 [shape = 'u32[]', space=smem, size = 0x4, offset = 0x4, fixed_abs, tag = 'smem constant byte address 0x4 - core index']
  #allocation1 [shape = 'u32[72,128]{1,0:T(1,128)}', space=vmem, size = 0x9000, scoped, tag = 'internal scratch']
  %s0 = inlined_call_operand.hbm [shape: f32[4,128], index: 0, kind: input, shape index: {}]
  %s1 = inlined_call_operand.hbm [shape: f32[1,128], index: 1, kind: input, shape index: {}]
  %s2 = inlined_call_operand.vmem [shape: f32[1,128], index: 2, kind: input, shape index: {}]
  %s3 = inlined_call_operand.hbm [shape: f32[4,128], index: 3, kind: output, shape index: {}]
  %s4 = sld [smem:[#allocation0]]
  $region30: #{tpu_custom_call.1} parent=0
    _
  %s6 = ssub.s32 1, %s4
  %s7 = scalar_select 0, %s6, %s4
  $region1: #{tpu_custom_call.1} parent=0
    #allocation2 [shape = 'u8[2048]{0}', space=vmem, size = 0x800, scoped, tag = 'input window, operand 0, single buffered']
    #allocation3 [shape = 's32[1]{0}', space=sflag, size = 0x4, scoped, tag = 'scoped memory for tpu_custom_call.1']
    #allocation4 [shape = 's32[1]{0}', space=sflag, size = 0x4, scoped, tag = 'scoped memory for tpu_custom_call.1']
    #allocation5 [shape = 'u8[512]{0}', space=vmem, size = 0x400, scoped, tag = 'input window, operand 1, single buffered']
    #allocation6 [shape = 's32[1]{0}', space=sflag, size = 0x4, scoped, tag = 'scoped memory for tpu_custom_call.1']
    #allocation7 [shape = 'u8[2048]{0}', space=vmem, size = 0x800, scoped, tag = 'output window, operand 0, single buffered']
    %8 = vsyncpa [#allocation3], 0
    %9 = vsyncpa [#allocation6], 0
    %10 = vsyncpa [#allocation4], 0
    // Predicated region
    $region2: #{tpu_custom_call.1} parent=1 // pred_check
      _
    $region3: #{tpu_custom_call.1} parent=1 // pred_check_branch
      %12 = sbr.rel (0) target = $region5
    $region4: #{tpu_custom_call.1} parent=1 // pred_region
      %14 = vsyncadd [#allocation3], 0
      %s16 = sshll.u32 %s0, 4
      %s17 = int_to_ptr.hbm [resolvable:$true] %s16
      %s18 = sshll.u32 [#allocation2], 4
      %s19 = int_to_ptr.vmem [resolvable:$true] %s18
      %21 = dma.hbm_to_vmem [thread:$0]  %s17, 64, %s19, [#allocation3]
    $region5: #{tpu_custom_call.1} parent=1 // pred_fallthru
      _
    // Predicated region
    $region6: #{tpu_custom_call.1} parent=1 // pred_check
      _
    $region7: #{tpu_custom_call.1} parent=1 // pred_check_branch
      %23 = sbr.rel (0) target = $region9
    $region8: #{tpu_custom_call.1} parent=1 // pred_region
      %25 = vsyncadd [#allocation6], 0
      %s27 = sshll.u32 %s1, 4
      %s28 = int_to_ptr.hbm [resolvable:$true] %s27
      %s29 = sshll.u32 [#allocation5], 4
      %s30 = int_to_ptr.vmem [resolvable:$true] %s29
      %32 = dma.hbm_to_vmem [thread:$0]  %s28, 16, %s30, [#allocation6]
    $region9: #{tpu_custom_call.1} parent=1 // pred_fallthru
      _
    // Predicated region
    $region10: #{tpu_custom_call.1} parent=1 // pred_check
      _
    $region11: #{tpu_custom_call.1} parent=1 // pred_check_branch
      %34 = sbr.rel (0) target = $region13
    $region12: #{tpu_custom_call.1} parent=1 // pred_region
      _
    $region13: #{tpu_custom_call.1} parent=1 // pred_fallthru
      _
    // Predicated region
    $region14: #{tpu_custom_call.1} parent=1 // pred_check
      _
    $region15: #{tpu_custom_call.1} parent=1 // pred_check_branch
      %36 = sbr.rel (0) target = $region17
    $region16: #{tpu_custom_call.1} parent=1 // pred_region
      %38 = dma.done [#allocation3], 64
    $region17: #{tpu_custom_call.1} parent=1 // pred_fallthru
      _
    // Predicated region
    $region18: #{tpu_custom_call.1} parent=1 // pred_check
      _
    $region19: #{tpu_custom_call.1} parent=1 // pred_check_branch
      %40 = sbr.rel (0) target = $region21
    $region20: #{tpu_custom_call.1} parent=1 // pred_region
      %42 = dma.done [#allocation6], 16
    $region21: #{tpu_custom_call.1} parent=1 // pred_fallthru
      _
    %v43 = vld [vmem:[#allocation2] sm:$0xf]
    %v44 = vlaneseq
    %v45 = vand.u32 %v44, 127
    %46 = vrot.lane.b32.xlu0 %v43, 127
    %v47 = vpop.permute.xlu0 %46
    %48 = vrot.lane.b32.xlu0 %v43, 1
    %v49 = vpop.permute.xlu0 %48
    %v50 = vand.u32 %v45, 1
    %vm51 = vcmp.eq.s32.totalorder %v50, 0
    %v52 = vsel %vm51, %v47, %v49
    %v53 = vadd.f32 %v43, %v52
    %54 = vrot.lane.b32.xlu0 %v53, 126
    %v55 = vpop.permute.xlu0 %54
    %56 = vrot.lane.b32.xlu0 %v53, 2
    %v57 = vpop.permute.xlu0 %56
    %v58 = vand.u32 %v45, 2
    %vm59 = vcmp.eq.s32.totalorder %v58, 0
    %v60 = vsel %vm59, %v55, %v57
    %v61 = vadd.f32 %v53, %v60
    %62 = vrot.lane.b32.xlu0 %v61, 124
    %v63 = vpop.permute.xlu0 %62
    %64 = vrot.lane.b32.xlu0 %v61, 4
    %v65 = vpop.permute.xlu0 %64
    %v66 = vand.u32 %v45, 4
    %vm67 = vcmp.eq.s32.totalorder %v66, 0
    %v68 = vsel %vm67, %v63, %v65
    %v69 = vadd.f32 %v61, %v68
    %70 = vrot.lane.b32.xlu0 %v69, 120
    %v71 = vpop.permute.xlu0 %70
    %72 = vrot.lane.b32.xlu0 %v69, 8
    %v73 = vpop.permute.xlu0 %72
    %v74 = vand.u32 %v45, 8
    %vm75 = vcmp.eq.s32.totalorder %v74, 0
    %v76 = vsel %vm75, %v71, %v73
    %v77 = vadd.f32 %v69, %v76
    %78 = vrot.lane.b32.xlu0 %v77, 112
    %v79 = vpop.permute.xlu0 %78
    %80 = vrot.lane.b32.xlu0 %v77, 16
    %v81 = vpop.permute.xlu0 %80
    %v82 = vand.u32 %v45, 16
    %vm83 = vcmp.eq.s32.totalorder %v82, 0
    %v84 = vsel %vm83, %v79, %v81
    %v85 = vadd.f32 %v77, %v84
    %v86 = vmul.f32 %v85, 0.03125
    %v87 = vsub.f32 %v43, %v86
    %v88 = vmul.f32 %v87, %v87
    %89 = vrot.lane.b32.xlu0 %v88, 127
    %v90 = vpop.permute.xlu0 %89
    %91 = vrot.lane.b32.xlu0 %v88, 1
    %v92 = vpop.permute.xlu0 %91
    %v93 = vsel %vm51, %v90, %v92
    %v94 = vadd.f32 %v88, %v93
    %95 = vrot.lane.b32.xlu0 %v94, 126
    %v96 = vpop.permute.xlu0 %95
    %97 = vrot.lane.b32.xlu0 %v94, 2
    %v98 = vpop.permute.xlu0 %97
    %v99 = vsel %vm59, %v96, %v98
    %v100 = vadd.f32 %v94, %v99
    %101 = vrot.lane.b32.xlu0 %v100, 124
    %v102 = vpop.permute.xlu0 %101
    %103 = vrot.lane.b32.xlu0 %v100, 4
    %v104 = vpop.permute.xlu0 %103
    %v105 = vsel %vm67, %v102, %v104
    %v106 = vadd.f32 %v100, %v105
    %107 = vrot.lane.b32.xlu0 %v106, 120
    %v108 = vpop.permute.xlu0 %107
    %109 = vrot.lane.b32.xlu0 %v106, 8
    %v110 = vpop.permute.xlu0 %109
    %v111 = vsel %vm75, %v108, %v110
    %v112 = vadd.f32 %v106, %v111
    %113 = vrot.lane.b32.xlu0 %v112, 112
    %v114 = vpop.permute.xlu0 %113
    %115 = vrot.lane.b32.xlu0 %v112, 16
    %v116 = vpop.permute.xlu0 %115
    %v117 = vsel %vm83, %v114, %v116
    %v118 = vadd.f32 %v112, %v117
    %v119 = vmul.f32 %v118, 0.032258064
    %v120 = vrsqrt.pop %v119
    %v121 = vmul.f32 %v120, %v119
    %v122 = vmul.f32 %v121, %v120
    %v123 = vmul.f32 0.5, %v122
    %v124 = vsub.f32 1.5, %v123
    %v125 = vmul.f32 %v120, %v124
    %v126 = vmul.f32 %v119, %v125
    %vm127 = vcmp.eq.f32.partialorder %v119, inf
    %v128 = vsel %vm127, %v119, %v126
    %vm129 = vcmp.eq.f32.partialorder %v119, 0.0
    %v130 = vand.u32 %v119, 2147483648
    %v131 = vsel %vm129, %v130, %v128
    %v132 = vadd.f32 %v131, 1e-06
    %v133 = vrcp.pop %v132
    %v134 = vmul.f32 %v132, %v133
    %v135 = vsub.f32 1.0, %v134
    %v136 = vmul.f32 %v133, %v135
    %v137 = vadd.f32 %v133, %v136
    %vm138 = vweird.f32 %v132
    %vm139 = vweird.f32 %v133
    %vm140 = vmor %vm138, %vm139
    %v141 = vsel %vm140, %v133, %v137
    %v142 = vand.u32 2147483647, %v132
    %vm143 = vcmp.eq.f32.partialorder %v142, 8.507059e+37
    %v144 = vand.u32 %v132, 2147483648
    %v145 = vor.u32 1.1754944e-38, %v144
    %v146 = vsel %vm143, %v145, %v141
    %v147 = vmul.f32 %v87, %v146
    %v148 = vld [vmem:[#allocation5] sm:$0x1]
    %v149 = vld [vmem:[%s2] sm:$0x1]
    %v151 = vperm.slane %v148, 0
    %v153 = vmul.f32 %v151, %v147
    %v155 = vperm.slane %v149, 0
    %v157 = vadd.f32 %v153, %v155
    %158 = vst [vmem:[#allocation7] sm:$0xf] %v157
    // Predicated region
    $region22: #{tpu_custom_call.1} parent=1 // pred_check
      _
    $region23: #{tpu_custom_call.1} parent=1 // pred_check_branch
      %160 = sbr.rel (0) target = $region25
    $region24: #{tpu_custom_call.1} parent=1 // pred_region
      %162 = vsyncadd [#allocation4], 0
      %s164 = sshll.u32 [#allocation7], 4
      %s165 = int_to_ptr.vmem [resolvable:$true] %s164
      %s166 = sshll.u32 %s3, 4
      %s167 = int_to_ptr.hbm [resolvable:$true] %s166
      %169 = dma.vmem_to_hbm [thread:$0]  %s165, 64, %s167, [#allocation4]
    $region25: #{tpu_custom_call.1} parent=1 // pred_fallthru
      _
    // Predicated region
    $region26: #{tpu_custom_call.1} parent=1 // pred_check
      _
    $region27: #{tpu_custom_call.1} parent=1 // pred_check_branch
      %171 = sbr.rel (0) target = $region29
    $region28: #{tpu_custom_call.1} parent=1 // pred_region
      %173 = dma.done [#allocation4], 64
    $region29: #{tpu_custom_call.1} parent=1 // pred_fallthru
      _
    %174 = vsyncpa [#allocation3], 1
    %175 = vsyncpa [#allocation6], 1
    %176 = vsyncpa [#allocation4], 1

</llo_original>
